<compile_context>
chip_gen: v7x
topology: tpu7x:2x2x1
jax: 0.10.0
libtpu: 0.0.40
codegen_flags: <defaults>
</compile_context>

<pallas_src>
import jax
import jax.numpy as jnp
from jax.experimental import pallas as pl
from jax.experimental.pallas import tpu as pltpu

# Module constants (ConvTranspose2d(3, 64, 3, stride=1, padding=2))
CIN, COUT, KH, KW = 3, 64, 3, 3
K = KH * KW * CIN          # 27 GEMM reduction rows
TP_MAX = 512               # pixel-tile width (lanes); 512 -> ~85% HBM roofline


def _round_up(a, b):
    return (a + b - 1) // b * b


def convt_gemm_kernel(w_ref, b_ref, p_ref, o_ref):
    # w_ref: (Cout, K)      equivalent VALID-conv weight (resident across grid)
    # b_ref: (Cout, 1)      bias (resident)
    # p_ref: (1, K, TP)     im2col patch tile for (batch n, pixel tile j)
    # o_ref: (1, Cout, TP)  lane-dense output tile
    acc = jnp.dot(w_ref[...], p_ref[0], preferred_element_type=jnp.float32)
    v1 = acc + b_ref[...]                                   # conv_transpose + bias
    # (relu(v1) + 3) / 6 == relu(v1)*(1/6) + 0.5  (torch clamps v4/v5 are unused:
    # the module returns v3 / 6).
    o_ref[0] = (jnp.maximum(v1, 0.0) * (1.0 / 6.0) + 0.5).astype(o_ref.dtype)


def prepare_params(w_convt, bias):
    """One-time transform of ConvTranspose2d params into GEMM form.

    w_convt: (Cin, Cout, KH, KW) PyTorch ConvTranspose2d weight.
    Returns:
      w_eff_T: (Cout, KH*KW*Cin) -- flipped kernel, columns ordered (ky, kx, c)
      b2:      (Cout, 1)
    """
    Cin, Cout, kh, kw = w_convt.shape
    w_flip = w_convt[:, :, ::-1, ::-1]                       # spatial flip
    w_eff_T = jnp.transpose(w_flip, (1, 2, 3, 0)).reshape(Cout, kh * kw * Cin)
    return w_eff_T, bias.reshape(Cout, 1)


@jax.jit
def model_forward(x, w_eff_T, b2):
    """x: (N, Cin, H, W) float32. Returns NCHW (N, Cout, H-2, W-2) float32."""
    N, Cin, H, W = x.shape
    Cout = w_eff_T.shape[0]
    # ConvTranspose2d(stride=1, padding=2, k=3) == VALID conv with flipped kernel.
    Hout, Wout = H - KH + 1, W - KW + 1
    HW = Hout * Wout

    # im2col with zero transposes: NCHW is channel-major already, so every tap is a
    # plain slice + reshape.  K row order = (ky, kx, c), matching prepare_params.
    taps = []
    for ky in range(KH):
        for kx in range(KW):
            taps.append(x[:, :, ky:ky + Hout, kx:kx + Wout].reshape(N, Cin, HW))
    patches = jnp.concatenate(taps, axis=1)                  # (N, K, HW)

    # Pixel-axis tiling: lane-aligned tiles, grid handles the partial last block, so
    # no wrapper-side pad of the full patch matrix is needed.
    TP = min(TP_MAX, _round_up(HW, 128))
    if HW < TP:  # only for very small images: top up so the single block is in-bounds
        patches = jnp.pad(patches, ((0, 0), (0, 0), (0, TP - HW)))
    grid_p = pl.cdiv(HW, TP)
    HW_pad = grid_p * TP                                     # lane-dense output columns

    out3 = pl.pallas_call(
        convt_gemm_kernel,
        out_shape=jax.ShapeDtypeStruct((N, Cout, HW_pad), jnp.float32),
        grid=(N, grid_p),
        in_specs=[
            pl.BlockSpec((Cout, K), lambda n, j: (0, 0)),      # weight, resident
            pl.BlockSpec((Cout, 1), lambda n, j: (0, 0)),      # bias, resident
            pl.BlockSpec((1, K, TP), lambda n, j: (n, 0, j)),  # patch tile
        ],
        out_specs=pl.BlockSpec((1, Cout, TP), lambda n, j: (n, 0, j)),
        compiler_params=pltpu.CompilerParams(
            dimension_semantics=("parallel", "parallel")),     # v7x: use both TCs
    )(w_eff_T, b2, patches)

    if HW_pad != HW:
        out3 = out3[:, :, :HW]
    return out3.reshape(N, Cout, Hout, Wout)                 # plain reshape, no transpose


if __name__ == "__main__":
    key = jax.random.PRNGKey(0)
    k_x, k_w, k_b = jax.random.split(key, 3)

    # Small shapes consistent with the module (Cin=3 fixed; 32x32 images, batch 2).
    N, H, W = 2, 32, 32
    x = jax.random.normal(k_x, (N, CIN, H, W), dtype=jnp.float32)
    # Deterministic synthetic params (ConvTranspose2d weight layout: (Cin, Cout, KH, KW))
    bound = 1.0 / (CIN * KH * KW) ** 0.5
    w = jax.random.uniform(k_w, (CIN, COUT, KH, KW), minval=-bound, maxval=bound,
                           dtype=jnp.float32)
    b = jax.random.uniform(k_b, (COUT,), minval=-bound, maxval=bound, dtype=jnp.float32)

    # Weight transform done once (not per forward call).
    w_eff_T, b2 = prepare_params(w, b)
    w_eff_T, b2 = jax.block_until_ready((w_eff_T, b2))

    out = model_forward(x, w_eff_T, b2)
    out = jax.block_until_ready(out)

    # Pure-JAX reference of the same math (NCHW conv, no transposes needed).
    w_conv = jnp.transpose(w[:, :, ::-1, ::-1], (1, 0, 2, 3))    # (Cout, Cin, KH, KW)
    ref = jax.lax.conv_general_dilated(
        x, w_conv, window_strides=(1, 1), padding="VALID",
        dimension_numbers=("NCHW", "OIHW", "NCHW")) + b.reshape(1, -1, 1, 1)
    ref = (jnp.maximum(ref, 0.0) + 3.0) / 6.0

    assert out.shape == (N, COUT, H - 2, W - 2), out.shape
    assert jnp.allclose(out, ref, atol=1e-5, rtol=1e-5), float(jnp.max(jnp.abs(out - ref)))

    print("KERNEL_OK")
</pallas_src>

<mosaic_0001>
module attributes {stable_mosaic.version = 11 : i64} {
  func.func @convt_gemm_kernel(%arg0: i32, %arg1: i32, %arg2: memref<64x27xf32, #tpu.memory_space<vmem>>, %arg3: memref<64x1xf32, #tpu.memory_space<vmem>>, %arg4: memref<1x27x512xf32, #tpu.memory_space<vmem>>, %arg5: memref<1x64x512xf32, #tpu.memory_space<vmem>>) attributes {dimension_semantics = [#tpu.dimension_semantics<parallel>, #tpu.dimension_semantics<parallel>], iteration_bounds = array<i64: 2, 2>, scalar_prefetch = 0 : i64, scratch_operands = 0 : i64, tpu.core_type = #tpu.core_type<tc>, window_params = [{pipeline_mode = #tpu.pipeline_mode<synchronous>, transform_indices = @transform_0, window_bounds = array<i64: 64, 27>}, {pipeline_mode = #tpu.pipeline_mode<synchronous>, transform_indices = @transform_1, window_bounds = array<i64: 64, 1>}, {transform_indices = @transform_2, window_bounds = array<i64: 1, 27, 512>}, {transform_indices = @transform_3, window_bounds = array<i64: 1, 64, 512>}]} {
    %c0 = arith.constant 0 : index
    %c0_0 = arith.constant 0 : index
    %0 = vector.load %arg2[%c0, %c0_0] : memref<64x27xf32, #tpu.memory_space<vmem>>, vector<64x27xf32>
    %c0_1 = arith.constant 0 : index
    %c0_2 = arith.constant 0 : index
    %c0_3 = arith.constant 0 : index
    %1 = vector.load %arg4[%c0_1, %c0_2, %c0_3] : memref<1x27x512xf32, #tpu.memory_space<vmem>>, vector<1x27x512xf32>
    %2 = vector.shape_cast %1 : vector<1x27x512xf32> to vector<27x512xf32>
    %cst = arith.constant dense<0.000000e+00> : vector<64x512xf32>
    %3 = tpu.matmul %0, %2, %cst {dimension_numbers = #tpu.dot_dimension_numbers<[1], [0], [0], [1], [0, 0, 1, 1], [], []>} : vector<64x27xf32>, vector<27x512xf32>, vector<64x512xf32> -> vector<64x512xf32>
    %c0_4 = arith.constant 0 : index
    %c0_5 = arith.constant 0 : index
    %4 = vector.load %arg3[%c0_4, %c0_5] : memref<64x1xf32, #tpu.memory_space<vmem>>, vector<64x1xf32>
    %5 = vector.broadcast %4 : vector<64x1xf32> to vector<64x512xf32>
    %6 = arith.addf %3, %5 : vector<64x512xf32>
    %cst_6 = arith.constant 0.000000e+00 : f32
    %7 = vector.broadcast %cst_6 : f32 to vector<64x512xf32>
    %8 = arith.maximumf %6, %7 : vector<64x512xf32>
    %cst_7 = arith.constant 0.166666672 : f32
    %9 = vector.broadcast %cst_7 : f32 to vector<64x512xf32>
    %10 = arith.mulf %8, %9 : vector<64x512xf32>
    %cst_8 = arith.constant 5.000000e-01 : f32
    %11 = vector.broadcast %cst_8 : f32 to vector<64x512xf32>
    %12 = arith.addf %10, %11 : vector<64x512xf32>
    %c0_9 = arith.constant 0 : index
    %c0_10 = arith.constant 0 : index
    %c0_11 = arith.constant 0 : index
    %13 = vector.load %arg5[%c0_9, %c0_10, %c0_11] : memref<1x64x512xf32, #tpu.memory_space<vmem>>, vector<1x64x512xf32>
    %14 = vector.shape_cast %13 : vector<1x64x512xf32> to vector<64x512xf32>
    %15 = vector.shape_cast %12 : vector<64x512xf32> to vector<1x64x512xf32>
    tpu.vector_store %arg5[%c0_9, %c0_10, %c0_11], %15 {strides = array<i32>} : memref<1x64x512xf32, #tpu.memory_space<vmem>>, vector<1x64x512xf32>,
    return
  }
  func.func @transform_0(%arg0: i32, %arg1: i32) -> (i32, i32) {
    %c0_i32 = arith.constant 0 : i32
    %c0_i32_0 = arith.constant 0 : i32
    %c0_i32_1 = arith.constant 0 : i32
    return %c0_i32, %c0_i32_0 : i32, i32
  }
  func.func @transform_1(%arg0: i32, %arg1: i32) -> (i32, i32) {
    %c0_i32 = arith.constant 0 : i32
    %c0_i32_0 = arith.constant 0 : i32
    %c0_i32_1 = arith.constant 0 : i32
    return %c0_i32, %c0_i32_0 : i32, i32
  }
  func.func @transform_2(%arg0: i32, %arg1: i32) -> (i32, i32, i32) {
    %c0_i32 = arith.constant 0 : i32
    %c0_i32_0 = arith.constant 0 : i32
    return %arg0, %c0_i32, %arg1 : i32, i32, i32
  }
  func.func @transform_3(%arg0: i32, %arg1: i32) -> (i32, i32, i32) {
    %c0_i32 = arith.constant 0 : i32
    %c0_i32_0 = arith.constant 0 : i32
    return %arg0, %c0_i32, %arg1 : i32, i32, i32
  }
}

</mosaic_0001>

<llo_original>
// kernel: model_forward.1
$region0: #{model_forward.1}
  #allocation0 [shape = 'u32[]', space=smem, size = 0x4, offset = 0x4, fixed_abs, tag = 'smem constant byte address 0x4 - core index']
  #allocation1 [shape = 'u32[144,128]{1,0:T(1,128)}', space=vmem, size = 0x12000, scoped, tag = 'internal scratch']
  %s0 = inlined_call_operand.vmem [shape: f32[64,27], index: 0, kind: input, shape index: {}]
  %s1 = inlined_call_operand.vmem [shape: f32[64,1], index: 1, kind: input, shape index: {}]
  %s2 = inlined_call_operand.vmem [shape: f32[2,27,900], index: 2, kind: input, shape index: {}]
  %s3 = inlined_call_operand.vmem [shape: f32[2,64,1024], index: 3, kind: output, shape index: {}]
  %s4 = sld [smem:[#allocation0]]
  $region87: #{model_forward.1} parent=0
    _
  %s6 = ssub.s32 1, %s4
  %s7 = scalar_select 0, %s6, %s4
  $region1: #{model_forward.1} parent=0
    #allocation2 [shape = 'u8[131072]{0}', space=vmem, size = 0x20000, scoped, tag = 'input window, operand 2']
    #allocation3 [shape = 'u8[262144]{0}', space=vmem, size = 0x40000, scoped, tag = 'output window, operand 0']
    loop: start=0, step=1, limit=6
    $region2: #{model_forward.1} parent=1 // loop_pre_header
      _
    $region3: #{model_forward.1} parent=1 // loop_header
      %s9 = sphi 0, %s13
      %p10 = scmp.ge.s32.totalorder %s9, 6
      %s16 = sphi 0, %s28
      %s17 = sphi 0, %s24
      %s18 = sphi 0, %s16
      %s19 = sphi 0, %s17
      %s20 = sphi 0, %s18
      %s21 = sphi 0, %s19
      %s29 = sphi 0, %s29
      %s31 = sphi 0, %s29
      %s32 = sphi 0, %s31
      %s46 = sphi 0, %s32
      %s50 = sphi 0, %s50
      %s52 = sphi 0, %s50
      %s53 = sphi 0, %s52
      %s67 = sphi 0, %s53
      %s75 = sphi 0, %s77
      %s78 = sphi 0, %s75
      %s79 = sphi 0, %s78
      %s95 = sphi 0, %s79
      %s103 = sphi 0, %s105
      %s106 = sphi 0, %s103
      %s107 = sphi 0, %s106
      %s123 = sphi 0, %s107
    $region4: #{model_forward.1} parent=1 // loop_header_branch
      %12 = sbr.rel (%p10) target = $region8
    $region5: #{model_forward.1} parent=1 // loop_body
      %s14 = ssub.s32 %s9, 1
      %s15 = ssub.s32 %s9, 2
      %s22 = sadd.s32 1, %s17
      %p23 = scmp.ge.s32.totalorder %s22, 2
      %s24 = scalar_select %p23, 0, %s22
      %s25 = sadd.s32 1, %s16
      %s26 = scalar_select %p23, %s25, %s16
      %p27 = scmp.ge.s32.totalorder %s26, 2
      %s28 = scalar_select %p27, 0, %s26
      %s30 = sadd.s32 %s29, 1
      %p33 = scmp.eq.s32.totalorder %s9, 3
      %p34 = scmp.ne.s32.totalorder %s29, %s31
      %p35 = scmp.eq.s32.totalorder %s9, 0
      %p36 = por %p34, %p35
      %p37 = scmp.ne.s32.totalorder %s29, %s31
      %p38 = scmp.eq.s32.totalorder %s14, 3
      %p39 = por %p37, %p38
      %p40 = scmp.ne.s32.totalorder %s31, %s32
      %p41 = scmp.eq.s32.totalorder %s14, 0
      %p42 = por %p40, %p41
      %p43 = scmp.ne.s32.totalorder %s31, %s32
      %p44 = scmp.eq.s32.totalorder %s15, 3
      %p45 = por %p43, %p44
      %p47 = scmp.ne.s32.totalorder %s32, %s46
      %p48 = scmp.eq.s32.totalorder %s15, 0
      %p49 = por %p47, %p48
      %s51 = sadd.s32 %s50, 1
      %p54 = scmp.eq.s32.totalorder %s9, 3
      %p55 = scmp.ne.s32.totalorder %s50, %s52
      %p56 = scmp.eq.s32.totalorder %s9, 0
      %p57 = por %p55, %p56
      %p58 = scmp.ne.s32.totalorder %s50, %s52
      %p59 = scmp.eq.s32.totalorder %s14, 3
      %p60 = por %p58, %p59
      %p61 = scmp.ne.s32.totalorder %s52, %s53
      %p62 = scmp.eq.s32.totalorder %s14, 0
      %p63 = por %p61, %p62
      %p64 = scmp.ne.s32.totalorder %s52, %s53
      %p65 = scmp.eq.s32.totalorder %s15, 3
      %p66 = por %p64, %p65
      %p68 = scmp.ne.s32.totalorder %s53, %s67
      %p69 = scmp.eq.s32.totalorder %s15, 0
      %p70 = por %p68, %p69
      %s71 = ssub.s32 %s16, %s28
      %s72 = ssub.s32 %s17, %s24
      %s73 = sor.u32 %s71, %s72
      %p74 = scmp.eq.s32.totalorder %s73, 0
      %s76 = sadd.s32 %s75, 1
      %s77 = scalar_select %p74, %s75, %s76
      %p80 = pneg %p74
      %p81 = scmp.eq.s32.totalorder %s9, 3
      %p82 = por %p80, %p81
      %p83 = scmp.ne.s32.totalorder %s75, %s78
      %p84 = scmp.eq.s32.totalorder %s9, 0
      %p85 = por %p83, %p84
      %p86 = scmp.ne.s32.totalorder %s75, %s78
      %p87 = scmp.eq.s32.totalorder %s14, 3
      %p88 = por %p86, %p87
      %p89 = scmp.ne.s32.totalorder %s78, %s79
      %p90 = scmp.eq.s32.totalorder %s14, 0
      %p91 = por %p89, %p90
      %p92 = scmp.ne.s32.totalorder %s78, %s79
      %p93 = scmp.eq.s32.totalorder %s15, 3
      %p94 = por %p92, %p93
      %p96 = scmp.ne.s32.totalorder %s79, %s95
      %p97 = scmp.eq.s32.totalorder %s15, 0
      %p98 = por %p96, %p97
      %s99 = ssub.s32 %s16, %s28
      %s100 = ssub.s32 %s17, %s24
      %s101 = sor.u32 %s99, %s100
      %p102 = scmp.eq.s32.totalorder %s101, 0
      %s104 = sadd.s32 %s103, 1
      %s105 = scalar_select %p102, %s103, %s104
      %p108 = pneg %p102
      %p109 = scmp.eq.s32.totalorder %s9, 3
      %p110 = por %p108, %p109
      %p111 = scmp.ne.s32.totalorder %s103, %s106
      %p112 = scmp.eq.s32.totalorder %s9, 0
      %p113 = por %p111, %p112
      %p114 = scmp.ne.s32.totalorder %s103, %s106
      %p115 = scmp.eq.s32.totalorder %s14, 3
      %p116 = por %p114, %p115
      %p117 = scmp.ne.s32.totalorder %s106, %s107
      %p118 = scmp.eq.s32.totalorder %s14, 0
      %p119 = por %p117, %p118
      %p120 = scmp.ne.s32.totalorder %s106, %s107
      %p121 = scmp.eq.s32.totalorder %s15, 3
      %p122 = por %p120, %p121
      %p124 = scmp.ne.s32.totalorder %s107, %s123
      %p125 = scmp.eq.s32.totalorder %s15, 0
      %p126 = por %p124, %p125
      %p127 = scmp.le.s32.totalorder 1, %s9
      %p128 = scmp.lt.s32.totalorder %s9, 5
      %p129 = pnand %p127, %p128
      %p130 = pneg %p129
      // Predicated region
      $region9: #{model_forward.1} parent=5 // pred_check
        _
      $region10: #{model_forward.1} parent=5 // pred_check_branch
        %132 = sbr.rel (%p129) target = $region12
      $region11: #{model_forward.1} parent=5 // pred_region
        %s133 = ssub.s32 %s9, 1
        // Predicated region
        $region13: #{model_forward.1} parent=11 // pred_check
          %p134 = pneg %p42
        $region14: #{model_forward.1} parent=11 // pred_check_branch
          %136 = sbr.rel (%p134) target = $region16
        $region15: #{model_forward.1} parent=11 // pred_region
          _
        $region16: #{model_forward.1} parent=11 // pred_fallthru
          _
        // Predicated region
        $region17: #{model_forward.1} parent=11 // pred_check
          %p137 = pneg %p63
        $region18: #{model_forward.1} parent=11 // pred_check_branch
          %139 = sbr.rel (%p137) target = $region20
        $region19: #{model_forward.1} parent=11 // pred_region
          _
        $region20: #{model_forward.1} parent=11 // pred_fallthru
          _
      $region12: #{model_forward.1} parent=5 // pred_fallthru
        _
      %p140 = scmp.lt.s32.totalorder %s9, 4
      // Predicated region
      $region21: #{model_forward.1} parent=5 // pred_check
        %p141 = pneg %p140
      $region22: #{model_forward.1} parent=5 // pred_check_branch
        %143 = sbr.rel (%p141) target = $region24
      $region23: #{model_forward.1} parent=5 // pred_region
        // Predicated region
        $region25: #{model_forward.1} parent=23 // pred_check
          %p144 = pneg %p85
        $region26: #{model_forward.1} parent=23 // pred_check_branch
          %146 = sbr.rel (%p144) target = $region28
        $region27: #{model_forward.1} parent=23 // pred_region
          %s147 = sand.u32 %s75, 1
          %s148 = sand.u32 %s75, 1
          %s149 = smul.addr %s148, 128
          %s150 = scalar_lea.vmem [#allocation2], %s149
          %s151 = smul.u32 4, %s17
          %s152 = smul.addr %s16, 32
          %s153 = sadd.s32 %s151, %s152
          %s154 = smul.addr %s153, 8
          %s155 = scalar_lea.vmem %s2, %s154
          // Predicated region
          $region29: #{model_forward.1} parent=27 // pred_check
            _
          $region30: #{model_forward.1} parent=27 // pred_check_branch
            %157 = sbr.rel (0) target = $region32
          $region31: #{model_forward.1} parent=27 // pred_region
            // Predicated region
            $region33: #{model_forward.1} parent=31 // pred_check
              _
            $region34: #{model_forward.1} parent=31 // pred_check_branch
              %159 = sbr.rel (0) target = $region36
            $region35: #{model_forward.1} parent=31 // pred_region
              loop: start=0, step=1, limit=1
              $region37: #{model_forward.1} parent=35 // loop_pre_header
                _
              $region38: #{model_forward.1} parent=35 // loop_header
                %s161 = sphi 0, %s165
                %p162 = scmp.ge.s32.totalorder %s161, 1
                %s166 = sphi %s155, %s155
                %s167 = sphi %s150, %s150
              $region39: #{model_forward.1} parent=35 // loop_header_branch
                %164 = sbr.rel (%p162) target = $region43
              $region40: #{model_forward.1} parent=35 // loop_body
                %v168 = vld [vmem:[%s166] sm:$0xff]
                %169 = vst [vmem:[%s167] sm:$0xff] %v168
                %v170 = vld [vmem:[%s166 + $0x8] sm:$0xff]
                %171 = vst [vmem:[%s167 + $0x8] sm:$0xff] %v170
                %v172 = vld [vmem:[%s166 + $0x10] sm:$0xff]
                %173 = vst [vmem:[%s167 + $0x10] sm:$0xff] %v172
                %v174 = vld [vmem:[%s166 + $0x18] sm:$0xff]
                %175 = vst [vmem:[%s167 + $0x18] sm:$0xff] %v174
                %v176 = vld [vmem:[%s166 + $0x40] sm:$0xff]
                %177 = vst [vmem:[%s167 + $0x20] sm:$0xff] %v176
                %v178 = vld [vmem:[%s166 + $0x48] sm:$0xff]
                %179 = vst [vmem:[%s167 + $0x28] sm:$0xff] %v178
                %v180 = vld [vmem:[%s166 + $0x50] sm:$0xff]
                %181 = vst [vmem:[%s167 + $0x30] sm:$0xff] %v180
                %v182 = vld [vmem:[%s166 + $0x58] sm:$0xff]
                %183 = vst [vmem:[%s167 + $0x38] sm:$0xff] %v182
                %v184 = vld [vmem:[%s166 + $0x80] sm:$0xff]
                %185 = vst [vmem:[%s167 + $0x40] sm:$0xff] %v184
                %v186 = vld [vmem:[%s166 + $0x88] sm:$0xff]
                %187 = vst [vmem:[%s167 + $0x48] sm:$0xff] %v186
                %v188 = vld [vmem:[%s166 + $0x90] sm:$0xff]
                %189 = vst [vmem:[%s167 + $0x50] sm:$0xff] %v188
                %v190 = vld [vmem:[%s166 + $0x98] sm:$0xff]
                %191 = vst [vmem:[%s167 + $0x58] sm:$0xff] %v190
                %v192 = vld [vmem:[%s166 + $0xc0] sm:$0xff]
                %193 = vst [vmem:[%s167 + $0x60] sm:$0xff] %v192
                %v194 = vld [vmem:[%s166 + $0xc8] sm:$0xff]
                %195 = vst [vmem:[%s167 + $0x68] sm:$0xff] %v194
                %v196 = vld [vmem:[%s166 + $0xd0] sm:$0xff]
                %197 = vst [vmem:[%s167 + $0x70] sm:$0xff] %v196
                %v198 = vld [vmem:[%s166 + $0xd8] sm:$0xff]
                %199 = vst [vmem:[%s167 + $0x78] sm:$0xff] %v198
              $region41: #{model_forward.1} parent=35 // loop_footer
                %s165 = sadd.s32 1, %s161
              $region42: #{model_forward.1} parent=35 // loop_footer_branch
                %160 = sbr.rel target = $region38
              $region43: #{model_forward.1} parent=35 // loop_exit
                _
            $region36: #{model_forward.1} parent=31 // pred_fallthru
              _
            // Predicated region
            $region44: #{model_forward.1} parent=31 // pred_check
              _
            $region45: #{model_forward.1} parent=31 // pred_check_branch
              %201 = sbr.rel target = $region47
            $region46: #{model_forward.1} parent=31 // pred_region
              _
            $region47: #{model_forward.1} parent=31 // pred_fallthru
              _
          $region32: #{model_forward.1} parent=27 // pred_fallthru
            _
          %202 = vnop
        $region28: #{model_forward.1} parent=23 // pred_fallthru
          _
      $region24: #{model_forward.1} parent=5 // pred_fallthru
        _
      %p203 = scmp.le.s32.totalorder 1, %s9
      %p204 = scmp.lt.s32.totalorder %s9, 5
      %p205 = pnand %p203, %p204
      %p206 = pneg %p205
      // Predicated region
      $region48: #{model_forward.1} parent=5 // pred_check
        _
      $region49: #{model_forward.1} parent=5 // pred_check_branch
        %208 = sbr.rel (%p205) target = $region51
      $region50: #{model_forward.1} parent=5 // pred_region
        %s209 = ssub.s32 %s9, 1
        %s210 = sand.u32 %s78, 1
        %s211 = sand.u32 %s78, 1
        %s212 = smul.addr %s211, 128
        %s213 = scalar_lea.vmem [#allocation2], %s212
        // Predicated region
        $region52: #{model_forward.1} parent=50 // pred_check
          %p214 = pneg %p91
        $region53: #{model_forward.1} parent=50 // pred_check_branch
          %216 = sbr.rel (%p214) target = $region55
        $region54: #{model_forward.1} parent=50 // pred_region
          _
        $region55: #{model_forward.1} parent=50 // pred_fallthru
          _
        %p217 = pneg %p42
        %p218 = pneg %p39
        %p219 = pneg %p63
        %p220 = pneg %p60
        %s221 = sand.u32 %s78, 1
        %s222 = sand.u32 %s78, 1
        %s223 = smul.addr %s222, 128
        %s224 = scalar_lea.vmem [#allocation2], %s223
        %p225 = pneg %p91
        %p226 = pneg %p88
        %p227 = pneg %p119
        %p228 = pneg %p116
        %s229 = sand.u32 %s106, 1
        %s230 = sand.u32 %s106, 1
        %s231 = smul.addr %s230, 256
        %s232 = scalar_lea.vmem [#allocation3], %s231
        %s233 = smul.u32 4, %s19
        %s234 = smul.u32 4, %s19
        %v235 = vld [vmem:[%s0] sm:$0xff]
        %v236 = vld [vmem:[%s0 + $0x8] sm:$0xff]
        %v237 = vld [vmem:[%s0 + $0x10] sm:$0xff]
        %v238 = vld [vmem:[%s0 + $0x18] sm:$0xff]
        %v239 = vld [vmem:[%s0 + $0x20] sm:$0xff]
        %v240 = vld [vmem:[%s0 + $0x28] sm:$0xff]
        %v241 = vld [vmem:[%s0 + $0x30] sm:$0xff]
        %v242 = vld [vmem:[%s0 + $0x38] sm:$0xff]
        %v243 = vld [vmem:[%s213] sm:$0xff]
        %v244 = vld [vmem:[%s213 + $0x8] sm:$0xff]
        %v245 = vld [vmem:[%s213 + $0x10] sm:$0xff]
        %v246 = vld [vmem:[%s213 + $0x18] sm:$0xff]
        %v247 = vld [vmem:[%s213 + $0x20] sm:$0xff]
        %v248 = vld [vmem:[%s213 + $0x28] sm:$0xff]
        %v249 = vld [vmem:[%s213 + $0x30] sm:$0xff]
        %v250 = vld [vmem:[%s213 + $0x38] sm:$0xff]
        %v251 = vld [vmem:[%s213 + $0x40] sm:$0xff]
        %v252 = vld [vmem:[%s213 + $0x48] sm:$0xff]
        %v253 = vld [vmem:[%s213 + $0x50] sm:$0xff]
        %v254 = vld [vmem:[%s213 + $0x58] sm:$0xff]
        %v255 = vld [vmem:[%s213 + $0x60] sm:$0x7]
        %v256 = vld [vmem:[%s213 + $0x68] sm:$0x7]
        %v257 = vld [vmem:[%s213 + $0x70] sm:$0x7]
        %v258 = vld [vmem:[%s213 + $0x78] sm:$0x7]
        %v259 = vld [vmem:[%s1] sm:$0xff]
        %v260 = vld [vmem:[%s1 + $0x8] sm:$0xff]
        %v261 = vld [vmem:[%s1 + $0x10] sm:$0xff]
        %v262 = vld [vmem:[%s1 + $0x18] sm:$0xff]
        %v263 = vld [vmem:[%s1 + $0x20] sm:$0xff]
        %v264 = vld [vmem:[%s1 + $0x28] sm:$0xff]
        %v265 = vld [vmem:[%s1 + $0x30] sm:$0xff]
        %v266 = vld [vmem:[%s1 + $0x38] sm:$0xff]
        %268 = vset.pattern.permute.xlu0 0
        %269 = vperm.xlu0 %268, %v259
        %v270 = vpop.permute.xlu0 %269
        %273 = vset.pattern.permute.xlu0 0
        %274 = vperm.xlu0 %273, %v260
        %v275 = vpop.permute.xlu0 %274
        %278 = vset.pattern.permute.xlu0 0
        %279 = vperm.xlu0 %278, %v261
        %v280 = vpop.permute.xlu0 %279
        %283 = vset.pattern.permute.xlu0 0
        %284 = vperm.xlu0 %283, %v262
        %v285 = vpop.permute.xlu0 %284
        %288 = vset.pattern.permute.xlu0 0
        %289 = vperm.xlu0 %288, %v263
        %v290 = vpop.permute.xlu0 %289
        %293 = vset.pattern.permute.xlu0 0
        %294 = vperm.xlu0 %293, %v264
        %v295 = vpop.permute.xlu0 %294
        %298 = vset.pattern.permute.xlu0 0
        %299 = vperm.xlu0 %298, %v265
        %v300 = vpop.permute.xlu0 %299
        %303 = vset.pattern.permute.xlu0 0
        %304 = vperm.xlu0 %303, %v266
        %v305 = vpop.permute.xlu0 %304
        %vm307 = vcmask 220160
        %v309 = vsel %vm307, %v235, 0
        %v312 = vsel %vm307, %v236, 0
        %v315 = vsel %vm307, %v237, 0
        %v318 = vsel %vm307, %v238, 0
        %v321 = vsel %vm307, %v239, 0
        %v324 = vsel %vm307, %v240, 0
        %v327 = vsel %vm307, %v241, 0
        %v330 = vsel %vm307, %v242, 0
        %vm332 = vcmask 1042432
        %v334 = vsel %vm332, %v255, 0
        %v337 = vsel %vm332, %v256, 0
        %v340 = vsel %vm332, %v257, 0
        %v343 = vsel %vm332, %v258, 0
        %345 = vmatprep.subr.mxu0 %v244
        %346 = vmatpush1.msra.mxu0 %v243
        %347 = vmatprep.subr.mxu0 %v248
        %348 = vmatpush1.msra.mxu0 %v247
        %349 = vmatprep.subr.mxu0 %v252
        %350 = vmatpush1.msra.mxu0 %v251
        %351 = vmatprep.subr.mxu0 %v337
        %352 = vmatpush1.msra.mxu0 %v334
        %353 = vmatprep.subr.mxu0 0.0
        %354 = vmatpush1.msra.mxu0 0.0
        %355 = vmatprep.subr.mxu0 0.0
        %356 = vmatpush1.msra.mxu0 0.0
        %357 = vmatprep.subr.mxu0 0.0
        %358 = vmatpush1.msra.mxu0 0.0
        %359 = vmatprep.subr.mxu0 0.0
        %360 = vmatpush1.msra.mxu0 0.0
        %361 = vmatprep.subr.mxu0 0.0
        %362 = vmatpush1.msra.mxu0 0.0
        %363 = vmatprep.subr.mxu0 0.0
        %364 = vmatpush1.msra.mxu0 0.0
        %365 = vmatprep.subr.mxu0 0.0
        %366 = vmatpush1.msra.mxu0 0.0
        %367 = vmatprep.subr.mxu0 0.0
        %368 = vmatpush1.msra.mxu0 0.0
        %369 = vmatprep.subr.mxu0 0.0
        %370 = vmatpush1.msra.mxu0 0.0
        %371 = vmatprep.subr.mxu0 0.0
        %372 = vmatpush1.msra.mxu0 0.0
        %373 = vmatprep.subr.mxu0 0.0
        %374 = vmatpush1.msra.mxu0 0.0
        %375 = vmatprep.subr.mxu0 0.0
        %376 = vmatpush1.msra.mxu0 0.0
        %377 = vmatprep.subr.mxu0 0.0
        %378 = vmatpush1.msra.mxu0 0.0
        %379 = vmatprep.subr.mxu0 0.0
        %380 = vmatpush1.msra.mxu0 0.0
        %381 = vmatprep.subr.mxu0 0.0
        %382 = vmatpush1.msra.mxu0 0.0
        %383 = vmatprep.subr.mxu0 0.0
        %384 = vmatpush1.msra.mxu0 0.0
        %385 = vmatprep.subr.mxu0 0.0
        %386 = vmatpush1.msra.mxu0 0.0
        %387 = vmatprep.subr.mxu0 0.0
        %388 = vmatpush1.msra.mxu0 0.0
        %389 = vmatprep.subr.mxu0 0.0
        %390 = vmatpush1.msra.mxu0 0.0
        %391 = vmatprep.subr.mxu0 0.0
        %392 = vmatpush1.msra.mxu0 0.0
        %393 = vmatprep.subr.mxu0 0.0
        %394 = vmatpush1.msra.mxu0 0.0
        %395 = vmatprep.subr.mxu0 0.0
        %396 = vmatpush1.msra.mxu0 0.0
        %397 = vmatprep.subr.mxu0 0.0
        %398 = vmatpush1.msra.mxu0 0.0
        %399 = vmatprep.subr.mxu0 0.0
        %400 = vmatpush1.msra.mxu0 0.0
        %401 = vmatprep.subr.mxu0 0.0
        %402 = vmatpush1.msra.mxu0 0.0
        %403 = vmatprep.subr.mxu0 0.0
        %404 = vmatpush1.msra.mxu0 0.0
        %405 = vmatprep.subr.mxu0 0.0
        %406 = vmatpush1.msra.mxu0 0.0
        %407 = vmatprep.subr.mxu0 0.0
        %408 = vmatpush1.msra.mxu0 0.0
        %409 = vmatprep.mubr.f32.mxu0 0.0
        %410 = vmatmul.mubr.f32.gmra.mrb[0].mxu0 %v309
        %v411 = vpop.f32.mrb[0].mxu0
        %v412 = vadd.f32 %v270, %v411
        %v413 = vpop.f32.mrb[0].mxu0
        %v414 = vadd.f32 %v270, %v413
        %415 = vmatprep.mubr.f32.mxu0 0.0
        %416 = vmatmul.mubr.f32.gmra.mrb[0].mxu0 %v312
        %v417 = vpop.f32.mrb[0].mxu0
        %v418 = vadd.f32 %v275, %v417
        %v419 = vpop.f32.mrb[0].mxu0
        %v420 = vadd.f32 %v275, %v419
        %421 = vmatprep.mubr.f32.mxu0 0.0
        %422 = vmatmul.mubr.f32.gmra.mrb[0].mxu0 %v315
        %v423 = vpop.f32.mrb[0].mxu0
        %v424 = vadd.f32 %v280, %v423
        %v425 = vpop.f32.mrb[0].mxu0
        %v426 = vadd.f32 %v280, %v425
        %427 = vmatprep.mubr.f32.mxu0 0.0
        %428 = vmatmul.mubr.f32.gmra.mrb[0].mxu0 %v318
        %v429 = vpop.f32.mrb[0].mxu0
        %v430 = vadd.f32 %v285, %v429
        %v431 = vpop.f32.mrb[0].mxu0
        %v432 = vadd.f32 %v285, %v431
        %433 = vmatprep.mubr.f32.mxu0 0.0
        %434 = vmatmul.mubr.f32.gmra.mrb[0].mxu0 %v321
        %v435 = vpop.f32.mrb[0].mxu0
        %v436 = vadd.f32 %v290, %v435
        %v437 = vpop.f32.mrb[0].mxu0
        %v438 = vadd.f32 %v290, %v437
        %439 = vmatprep.mubr.f32.mxu0 0.0
        %440 = vmatmul.mubr.f32.gmra.mrb[0].mxu0 %v324
        %v441 = vpop.f32.mrb[0].mxu0
        %v442 = vadd.f32 %v295, %v441
        %v443 = vpop.f32.mrb[0].mxu0
        %v444 = vadd.f32 %v295, %v443
        %445 = vmatprep.mubr.f32.mxu0 0.0
        %446 = vmatmul.mubr.f32.gmra.mrb[0].mxu0 %v327
        %v447 = vpop.f32.mrb[0].mxu0
        %v448 = vadd.f32 %v300, %v447
        %v449 = vpop.f32.mrb[0].mxu0
        %v450 = vadd.f32 %v300, %v449
        %451 = vmatprep.mubr.f32.mxu0 0.0
        %452 = vmatmul.mubr.f32.gmra.mrb[0].mxu0 %v330
        %v453 = vpop.f32.mrb[0].mxu0
        %v454 = vadd.f32 %v305, %v453
        %v455 = vpop.f32.mrb[0].mxu0
        %v456 = vadd.f32 %v305, %v455
        %457 = vdwg.mxu0
        %458 = vmatprep.subr.mxu0 %v246
        %459 = vmatpush1.msra.mxu0 %v245
        %460 = vmatprep.subr.mxu0 %v250
        %461 = vmatpush1.msra.mxu0 %v249
        %462 = vmatprep.subr.mxu0 %v254
        %463 = vmatpush1.msra.mxu0 %v253
        %464 = vmatprep.subr.mxu0 %v343
        %465 = vmatpush1.msra.mxu0 %v340
        %466 = vmatprep.subr.mxu0 0.0
        %467 = vmatpush1.msra.mxu0 0.0
        %468 = vmatprep.subr.mxu0 0.0
        %469 = vmatpush1.msra.mxu0 0.0
        %470 = vmatprep.subr.mxu0 0.0
        %471 = vmatpush1.msra.mxu0 0.0
        %472 = vmatprep.subr.mxu0 0.0
        %473 = vmatpush1.msra.mxu0 0.0
        %474 = vmatprep.subr.mxu0 0.0
        %475 = vmatpush1.msra.mxu0 0.0
        %476 = vmatprep.subr.mxu0 0.0
        %477 = vmatpush1.msra.mxu0 0.0
        %478 = vmatprep.subr.mxu0 0.0
        %479 = vmatpush1.msra.mxu0 0.0
        %480 = vmatprep.subr.mxu0 0.0
        %481 = vmatpush1.msra.mxu0 0.0
        %482 = vmatprep.subr.mxu0 0.0
        %483 = vmatpush1.msra.mxu0 0.0
        %484 = vmatprep.subr.mxu0 0.0
        %485 = vmatpush1.msra.mxu0 0.0
        %486 = vmatprep.subr.mxu0 0.0
        %487 = vmatpush1.msra.mxu0 0.0
        %488 = vmatprep.subr.mxu0 0.0
        %489 = vmatpush1.msra.mxu0 0.0
        %490 = vmatprep.subr.mxu0 0.0
        %491 = vmatpush1.msra.mxu0 0.0
        %492 = vmatprep.subr.mxu0 0.0
        %493 = vmatpush1.msra.mxu0 0.0
        %494 = vmatprep.subr.mxu0 0.0
        %495 = vmatpush1.msra.mxu0 0.0
        %496 = vmatprep.subr.mxu0 0.0
        %497 = vmatpush1.msra.mxu0 0.0
        %498 = vmatprep.subr.mxu0 0.0
        %499 = vmatpush1.msra.mxu0 0.0
        %500 = vmatprep.subr.mxu0 0.0
        %501 = vmatpush1.msra.mxu0 0.0
        %502 = vmatprep.subr.mxu0 0.0
        %503 = vmatpush1.msra.mxu0 0.0
        %504 = vmatprep.subr.mxu0 0.0
        %505 = vmatpush1.msra.mxu0 0.0
        %506 = vmatprep.subr.mxu0 0.0
        %507 = vmatpush1.msra.mxu0 0.0
        %508 = vmatprep.subr.mxu0 0.0
        %509 = vmatpush1.msra.mxu0 0.0
        %510 = vmatprep.subr.mxu0 0.0
        %511 = vmatpush1.msra.mxu0 0.0
        %512 = vmatprep.subr.mxu0 0.0
        %513 = vmatpush1.msra.mxu0 0.0
        %514 = vmatprep.subr.mxu0 0.0
        %515 = vmatpush1.msra.mxu0 0.0
        %516 = vmatprep.subr.mxu0 0.0
        %517 = vmatpush1.msra.mxu0 0.0
        %518 = vmatprep.subr.mxu0 0.0
        %519 = vmatpush1.msra.mxu0 0.0
        %520 = vmatprep.subr.mxu0 0.0
        %521 = vmatpush1.msra.mxu0 0.0
        %522 = vmatprep.mubr.f32.mxu0 0.0
        %523 = vmatmul.mubr.f32.gmra.mrb[0].mxu0 %v309
        %v524 = vpop.f32.mrb[0].mxu0
        %v525 = vadd.f32 %v270, %v524
        %v526 = vpop.f32.mrb[0].mxu0
        %v527 = vadd.f32 %v270, %v526
        %528 = vmatprep.mubr.f32.mxu0 0.0
        %529 = vmatmul.mubr.f32.gmra.mrb[0].mxu0 %v312
        %v530 = vpop.f32.mrb[0].mxu0
        %v531 = vadd.f32 %v275, %v530
        %v532 = vpop.f32.mrb[0].mxu0
        %v533 = vadd.f32 %v275, %v532
        %534 = vmatprep.mubr.f32.mxu0 0.0
        %535 = vmatmul.mubr.f32.gmra.mrb[0].mxu0 %v315
        %v536 = vpop.f32.mrb[0].mxu0
        %v537 = vadd.f32 %v280, %v536
        %v538 = vpop.f32.mrb[0].mxu0
        %v539 = vadd.f32 %v280, %v538
        %540 = vmatprep.mubr.f32.mxu0 0.0
        %541 = vmatmul.mubr.f32.gmra.mrb[0].mxu0 %v318
        %v542 = vpop.f32.mrb[0].mxu0
        %v543 = vadd.f32 %v285, %v542
        %v544 = vpop.f32.mrb[0].mxu0
        %v545 = vadd.f32 %v285, %v544
        %546 = vmatprep.mubr.f32.mxu0 0.0
        %547 = vmatmul.mubr.f32.gmra.mrb[0].mxu0 %v321
        %v548 = vpop.f32.mrb[0].mxu0
        %v549 = vadd.f32 %v290, %v548
        %v550 = vpop.f32.mrb[0].mxu0
        %v551 = vadd.f32 %v290, %v550
        %552 = vmatprep.mubr.f32.mxu0 0.0
        %553 = vmatmul.mubr.f32.gmra.mrb[0].mxu0 %v324
        %v554 = vpop.f32.mrb[0].mxu0
        %v555 = vadd.f32 %v295, %v554
        %v556 = vpop.f32.mrb[0].mxu0
        %v557 = vadd.f32 %v295, %v556
        %558 = vmatprep.mubr.f32.mxu0 0.0
        %559 = vmatmul.mubr.f32.gmra.mrb[0].mxu0 %v327
        %v560 = vpop.f32.mrb[0].mxu0
        %v561 = vadd.f32 %v300, %v560
        %v562 = vpop.f32.mrb[0].mxu0
        %v563 = vadd.f32 %v300, %v562
        %564 = vmatprep.mubr.f32.mxu0 0.0
        %565 = vmatmul.mubr.f32.gmra.mrb[0].mxu0 %v330
        %v566 = vpop.f32.mrb[0].mxu0
        %v567 = vadd.f32 %v305, %v566
        %v568 = vpop.f32.mrb[0].mxu0
        %v569 = vadd.f32 %v305, %v568
        %570 = vdwg.mxu0
        %v571 = vmax.f32 %v412, 0.0
        %v572 = vmax.f32 %v414, 0.0
        %v573 = vmax.f32 %v525, 0.0
        %v574 = vmax.f32 %v527, 0.0
        %v575 = vmax.f32 %v418, 0.0
        %v576 = vmax.f32 %v420, 0.0
        %v577 = vmax.f32 %v531, 0.0
        %v578 = vmax.f32 %v533, 0.0
        %v579 = vmax.f32 %v424, 0.0
        %v580 = vmax.f32 %v426, 0.0
        %v581 = vmax.f32 %v537, 0.0
        %v582 = vmax.f32 %v539, 0.0
        %v583 = vmax.f32 %v430, 0.0
        %v584 = vmax.f32 %v432, 0.0
        %v585 = vmax.f32 %v543, 0.0
        %v586 = vmax.f32 %v545, 0.0
        %v587 = vmax.f32 %v436, 0.0
        %v588 = vmax.f32 %v438, 0.0
        %v589 = vmax.f32 %v549, 0.0
        %v590 = vmax.f32 %v551, 0.0
        %v591 = vmax.f32 %v442, 0.0
        %v592 = vmax.f32 %v444, 0.0
        %v593 = vmax.f32 %v555, 0.0
        %v594 = vmax.f32 %v557, 0.0
        %v595 = vmax.f32 %v448, 0.0
        %v596 = vmax.f32 %v450, 0.0
        %v597 = vmax.f32 %v561, 0.0
        %v598 = vmax.f32 %v563, 0.0
        %v599 = vmax.f32 %v454, 0.0
        %v600 = vmax.f32 %v456, 0.0
        %v601 = vmax.f32 %v567, 0.0
        %v602 = vmax.f32 %v569, 0.0
        %v603 = vmul.f32 %v571, 0.16666667
        %v604 = vmul.f32 %v572, 0.16666667
        %v605 = vmul.f32 %v573, 0.16666667
        %v606 = vmul.f32 %v574, 0.16666667
        %v607 = vmul.f32 %v575, 0.16666667
        %v608 = vmul.f32 %v576, 0.16666667
        %v609 = vmul.f32 %v577, 0.16666667
        %v610 = vmul.f32 %v578, 0.16666667
        %v611 = vmul.f32 %v579, 0.16666667
        %v612 = vmul.f32 %v580, 0.16666667
        %v613 = vmul.f32 %v581, 0.16666667
        %v614 = vmul.f32 %v582, 0.16666667
        %v615 = vmul.f32 %v583, 0.16666667
        %v616 = vmul.f32 %v584, 0.16666667
        %v617 = vmul.f32 %v585, 0.16666667
        %v618 = vmul.f32 %v586, 0.16666667
        %v619 = vmul.f32 %v587, 0.16666667
        %v620 = vmul.f32 %v588, 0.16666667
        %v621 = vmul.f32 %v589, 0.16666667
        %v622 = vmul.f32 %v590, 0.16666667
        %v623 = vmul.f32 %v591, 0.16666667
        %v624 = vmul.f32 %v592, 0.16666667
        %v625 = vmul.f32 %v593, 0.16666667
        %v626 = vmul.f32 %v594, 0.16666667
        %v627 = vmul.f32 %v595, 0.16666667
        %v628 = vmul.f32 %v596, 0.16666667
        %v629 = vmul.f32 %v597, 0.16666667
        %v630 = vmul.f32 %v598, 0.16666667
        %v631 = vmul.f32 %v599, 0.16666667
        %v632 = vmul.f32 %v600, 0.16666667
        %v633 = vmul.f32 %v601, 0.16666667
        %v634 = vmul.f32 %v602, 0.16666667
        %v635 = vadd.f32 %v603, 0.5
        %v636 = vadd.f32 %v604, 0.5
        %v637 = vadd.f32 %v605, 0.5
        %v638 = vadd.f32 %v606, 0.5
        %v639 = vadd.f32 %v607, 0.5
        %v640 = vadd.f32 %v608, 0.5
        %v641 = vadd.f32 %v609, 0.5
        %v642 = vadd.f32 %v610, 0.5
        %v643 = vadd.f32 %v611, 0.5
        %v644 = vadd.f32 %v612, 0.5
        %v645 = vadd.f32 %v613, 0.5
        %v646 = vadd.f32 %v614, 0.5
        %v647 = vadd.f32 %v615, 0.5
        %v648 = vadd.f32 %v616, 0.5
        %v649 = vadd.f32 %v617, 0.5
        %v650 = vadd.f32 %v618, 0.5
        %v651 = vadd.f32 %v619, 0.5
        %v652 = vadd.f32 %v620, 0.5
        %v653 = vadd.f32 %v621, 0.5
        %v654 = vadd.f32 %v622, 0.5
        %v655 = vadd.f32 %v623, 0.5
        %v656 = vadd.f32 %v624, 0.5
        %v657 = vadd.f32 %v625, 0.5
        %v658 = vadd.f32 %v626, 0.5
        %v659 = vadd.f32 %v627, 0.5
        %v660 = vadd.f32 %v628, 0.5
        %v661 = vadd.f32 %v629, 0.5
        %v662 = vadd.f32 %v630, 0.5
        %v663 = vadd.f32 %v631, 0.5
        %v664 = vadd.f32 %v632, 0.5
        %v665 = vadd.f32 %v633, 0.5
        %v666 = vadd.f32 %v634, 0.5
        %667 = vst [vmem:[%s232] sm:$0xff] %v635
        %668 = vst [vmem:[%s232 + $0x8] sm:$0xff] %v636
        %669 = vst [vmem:[%s232 + $0x10] sm:$0xff] %v637
        %670 = vst [vmem:[%s232 + $0x18] sm:$0xff] %v638
        %671 = vst [vmem:[%s232 + $0x20] sm:$0xff] %v639
        %672 = vst [vmem:[%s232 + $0x28] sm:$0xff] %v640
        %673 = vst [vmem:[%s232 + $0x30] sm:$0xff] %v641
        %674 = vst [vmem:[%s232 + $0x38] sm:$0xff] %v642
        %675 = vst [vmem:[%s232 + $0x40] sm:$0xff] %v643
        %676 = vst [vmem:[%s232 + $0x48] sm:$0xff] %v644
        %677 = vst [vmem:[%s232 + $0x50] sm:$0xff] %v645
        %678 = vst [vmem:[%s232 + $0x58] sm:$0xff] %v646
        %679 = vst [vmem:[%s232 + $0x60] sm:$0xff] %v647
        %680 = vst [vmem:[%s232 + $0x68] sm:$0xff] %v648
        %681 = vst [vmem:[%s232 + $0x70] sm:$0xff] %v649
        %682 = vst [vmem:[%s232 + $0x78] sm:$0xff] %v650
        %683 = vst [vmem:[%s232 + $0x80] sm:$0xff] %v651
        %684 = vst [vmem:[%s232 + $0x88] sm:$0xff] %v652
        %685 = vst [vmem:[%s232 + $0x90] sm:$0xff] %v653
        %686 = vst [vmem:[%s232 + $0x98] sm:$0xff] %v654
        %687 = vst [vmem:[%s232 + $0xa0] sm:$0xff] %v655
        %688 = vst [vmem:[%s232 + $0xa8] sm:$0xff] %v656
        %689 = vst [vmem:[%s232 + $0xb0] sm:$0xff] %v657
        %690 = vst [vmem:[%s232 + $0xb8] sm:$0xff] %v658
        %691 = vst [vmem:[%s232 + $0xc0] sm:$0xff] %v659
        %692 = vst [vmem:[%s232 + $0xc8] sm:$0xff] %v660
        %693 = vst [vmem:[%s232 + $0xd0] sm:$0xff] %v661
        %694 = vst [vmem:[%s232 + $0xd8] sm:$0xff] %v662
        %695 = vst [vmem:[%s232 + $0xe0] sm:$0xff] %v663
        %696 = vst [vmem:[%s232 + $0xe8] sm:$0xff] %v664
        %697 = vst [vmem:[%s232 + $0xf0] sm:$0xff] %v665
        %698 = vst [vmem:[%s232 + $0xf8] sm:$0xff] %v666
        %s699 = sand.u32 %s106, 1
        %s700 = sand.u32 %s106, 1
        %s701 = smul.addr %s700, 256
        %s702 = scalar_lea.vmem [#allocation3], %s701
        // Predicated region
        $region56: #{model_forward.1} parent=50 // pred_check
          %p703 = pneg %p116
        $region57: #{model_forward.1} parent=50 // pred_check_branch
          %705 = sbr.rel (%p703) target = $region59
        $region58: #{model_forward.1} parent=50 // pred_region
          %s706 = smul.u32 4, %s19
          %s707 = smul.addr %s18, 64
          %s708 = sadd.s32 %s706, %s707
          %s709 = smul.addr %s708, 8
          %s710 = scalar_lea.vmem %s3, %s709
          // Predicated region
          $region60: #{model_forward.1} parent=58 // pred_check
            _
          $region61: #{model_forward.1} parent=58 // pred_check_branch
            %712 = sbr.rel (0) target = $region63
          $region62: #{model_forward.1} parent=58 // pred_region
            // Predicated region
            $region64: #{model_forward.1} parent=62 // pred_check
              _
            $region65: #{model_forward.1} parent=62 // pred_check_branch
              %714 = sbr.rel (0) target = $region67
            $region66: #{model_forward.1} parent=62 // pred_region
              loop: start=0, step=1, limit=1
              $region68: #{model_forward.1} parent=66 // loop_pre_header
                _
              $region69: #{model_forward.1} parent=66 // loop_header
                %s716 = sphi 0, %s720
                %p717 = scmp.ge.s32.totalorder %s716, 1
                %s721 = sphi %s702, %s702
                %s722 = sphi %s710, %s710
              $region70: #{model_forward.1} parent=66 // loop_header_branch
                %719 = sbr.rel (%p717) target = $region74
              $region71: #{model_forward.1} parent=66 // loop_body
                %v723 = vld [vmem:[%s721] sm:$0xff]
                %724 = vst [vmem:[%s722] sm:$0xff] %v723
                %v725 = vld [vmem:[%s721 + $0x8] sm:$0xff]
                %726 = vst [vmem:[%s722 + $0x8] sm:$0xff] %v725
                %v727 = vld [vmem:[%s721 + $0x10] sm:$0xff]
                %728 = vst [vmem:[%s722 + $0x10] sm:$0xff] %v727
                %v729 = vld [vmem:[%s721 + $0x18] sm:$0xff]
                %730 = vst [vmem:[%s722 + $0x18] sm:$0xff] %v729
                %v731 = vld [vmem:[%s721 + $0x20] sm:$0xff]
                %732 = vst [vmem:[%s722 + $0x40] sm:$0xff] %v731
                %v733 = vld [vmem:[%s721 + $0x28] sm:$0xff]
                %734 = vst [vmem:[%s722 + $0x48] sm:$0xff] %v733
                %v735 = vld [vmem:[%s721 + $0x30] sm:$0xff]
                %736 = vst [vmem:[%s722 + $0x50] sm:$0xff] %v735
                %v737 = vld [vmem:[%s721 + $0x38] sm:$0xff]
                %738 = vst [vmem:[%s722 + $0x58] sm:$0xff] %v737
                %v739 = vld [vmem:[%s721 + $0x40] sm:$0xff]
                %740 = vst [vmem:[%s722 + $0x80] sm:$0xff] %v739
                %v741 = vld [vmem:[%s721 + $0x48] sm:$0xff]
                %742 = vst [vmem:[%s722 + $0x88] sm:$0xff] %v741
                %v743 = vld [vmem:[%s721 + $0x50] sm:$0xff]
                %744 = vst [vmem:[%s722 + $0x90] sm:$0xff] %v743
                %v745 = vld [vmem:[%s721 + $0x58] sm:$0xff]
                %746 = vst [vmem:[%s722 + $0x98] sm:$0xff] %v745
                %v747 = vld [vmem:[%s721 + $0x60] sm:$0xff]
                %748 = vst [vmem:[%s722 + $0xc0] sm:$0xff] %v747
                %v749 = vld [vmem:[%s721 + $0x68] sm:$0xff]
                %750 = vst [vmem:[%s722 + $0xc8] sm:$0xff] %v749
                %v751 = vld [vmem:[%s721 + $0x70] sm:$0xff]
                %752 = vst [vmem:[%s722 + $0xd0] sm:$0xff] %v751
                %v753 = vld [vmem:[%s721 + $0x78] sm:$0xff]
                %754 = vst [vmem:[%s722 + $0xd8] sm:$0xff] %v753
                %v755 = vld [vmem:[%s721 + $0x80] sm:$0xff]
                %756 = vst [vmem:[%s722 + $0x100] sm:$0xff] %v755
                %v757 = vld [vmem:[%s721 + $0x88] sm:$0xff]
                %758 = vst [vmem:[%s722 + $0x108] sm:$0xff] %v757
                %v759 = vld [vmem:[%s721 + $0x90] sm:$0xff]
                %760 = vst [vmem:[%s722 + $0x110] sm:$0xff] %v759
                %v761 = vld [vmem:[%s721 + $0x98] sm:$0xff]
                %762 = vst [vmem:[%s722 + $0x118] sm:$0xff] %v761
                %v763 = vld [vmem:[%s721 + $0xa0] sm:$0xff]
                %764 = vst [vmem:[%s722 + $0x140] sm:$0xff] %v763
                %v765 = vld [vmem:[%s721 + $0xa8] sm:$0xff]
                %766 = vst [vmem:[%s722 + $0x148] sm:$0xff] %v765
                %v767 = vld [vmem:[%s721 + $0xb0] sm:$0xff]
                %768 = vst [vmem:[%s722 + $0x150] sm:$0xff] %v767
                %v769 = vld [vmem:[%s721 + $0xb8] sm:$0xff]
                %770 = vst [vmem:[%s722 + $0x158] sm:$0xff] %v769
                %v771 = vld [vmem:[%s721 + $0xc0] sm:$0xff]
                %772 = vst [vmem:[%s722 + $0x180] sm:$0xff] %v771
                %v773 = vld [vmem:[%s721 + $0xc8] sm:$0xff]
                %774 = vst [vmem:[%s722 + $0x188] sm:$0xff] %v773
                %v775 = vld [vmem:[%s721 + $0xd0] sm:$0xff]
                %776 = vst [vmem:[%s722 + $0x190] sm:$0xff] %v775
                %v777 = vld [vmem:[%s721 + $0xd8] sm:$0xff]
                %778 = vst [vmem:[%s722 + $0x198] sm:$0xff] %v777
                %v779 = vld [vmem:[%s721 + $0xe0] sm:$0xff]
                %780 = vst [vmem:[%s722 + $0x1c0] sm:$0xff] %v779
                %v781 = vld [vmem:[%s721 + $0xe8] sm:$0xff]
                %782 = vst [vmem:[%s722 + $0x1c8] sm:$0xff] %v781
                %v783 = vld [vmem:[%s721 + $0xf0] sm:$0xff]
                %784 = vst [vmem:[%s722 + $0x1d0] sm:$0xff] %v783
                %v785 = vld [vmem:[%s721 + $0xf8] sm:$0xff]
                %786 = vst [vmem:[%s722 + $0x1d8] sm:$0xff] %v785
              $region72: #{model_forward.1} parent=66 // loop_footer
                %s720 = sadd.s32 1, %s716
              $region73: #{model_forward.1} parent=66 // loop_footer_branch
                %715 = sbr.rel target = $region69
              $region74: #{model_forward.1} parent=66 // loop_exit
                _
            $region67: #{model_forward.1} parent=62 // pred_fallthru
              _
            // Predicated region
            $region75: #{model_forward.1} parent=62 // pred_check
              _
            $region76: #{model_forward.1} parent=62 // pred_check_branch
              %788 = sbr.rel target = $region78
            $region77: #{model_forward.1} parent=62 // pred_region
              _
            $region78: #{model_forward.1} parent=62 // pred_fallthru
              _
          $region63: #{model_forward.1} parent=58 // pred_fallthru
            _
          %789 = vnop
        $region59: #{model_forward.1} parent=50 // pred_fallthru
          _
      $region51: #{model_forward.1} parent=5 // pred_fallthru
        _
      %p790 = scmp.le.s32.totalorder 2, %s9
      // Predicated region
      $region79: #{model_forward.1} parent=5 // pred_check
        %p791 = pneg %p790
      $region80: #{model_forward.1} parent=5 // pred_check_branch
        %793 = sbr.rel (%p791) target = $region82
      $region81: #{model_forward.1} parent=5 // pred_region
        %s794 = ssub.s32 %s9, 2
        // Predicated region
        $region83: #{model_forward.1} parent=81 // pred_check
          %p795 = pneg %p122
        $region84: #{model_forward.1} parent=81 // pred_check_branch
          %797 = sbr.rel (%p795) target = $region86
        $region85: #{model_forward.1} parent=81 // pred_region
          %s798 = sand.u32 %s107, 1
          %s799 = sand.u32 %s107, 1
          %s800 = smul.addr %s799, 256
          %s801 = scalar_lea.vmem [#allocation3], %s800
        $region86: #{model_forward.1} parent=81 // pred_fallthru
          _
      $region82: #{model_forward.1} parent=5 // pred_fallthru
        _
    $region6: #{model_forward.1} parent=1 // loop_footer
      %s13 = sadd.s32 1, %s9
    $region7: #{model_forward.1} parent=1 // loop_footer_branch
      %8 = sbr.rel target = $region3
    $region8: #{model_forward.1} parent=1 // loop_exit
      _

</llo_original>
